<compile_context>
chip_gen: v7x
topology: tpu7x:2x2x1
jax: 0.10.0
libtpu: 0.0.40
codegen_flags: <defaults>
</compile_context>

<pallas_src>
import functools
import math

import jax
import jax.numpy as jnp
from jax.experimental import pallas as pl
from jax.experimental.pallas import tpu as pltpu


def _round_up(x, m):
    return ((x + m - 1) // m) * m


def _sublane_align(dtype):
    # 8 for f32, 16 for bf16, 32 for int8/fp8.
    return max(8, 32 // jnp.dtype(dtype).itemsize)


def _pick_tile(padded_dim, target, align):
    """Largest multiple of `align` <= target that evenly divides padded_dim."""
    t = max(align, min(target, padded_dim))
    t = (t // align) * align
    while padded_dim % t:
        t -= align
    return t


def _equal_linear_kernel(scale, activation, x_ref, w_ref, b_ref, o_ref, acc_ref):
    # x_ref: (tm, tk), w_ref: (tk, tn), b_ref: (1, tn) f32 (already * lr_mul),
    # o_ref: (tm, tn), acc_ref: (tm, tn) f32 scratch.
    k = pl.program_id(2)

    @pl.when(k == 0)
    def _():
        acc_ref[...] = jnp.zeros_like(acc_ref)

    # (tm, tk) @ (tk, tn) -> (tm, tn) on the MXU, f32 accumulation.
    acc_ref[...] += jnp.dot(x_ref[...], w_ref[...],
                            preferred_element_type=jnp.float32)

    @pl.when(k == pl.num_programs(2) - 1)
    def _():
        out = acc_ref[...] * jnp.float32(scale) + b_ref[...]
        if activation:
            # leaky_relu(out, 0.2) == max(out, 0.2*out)
            out = jnp.maximum(out, jnp.float32(0.2) * out)
        o_ref[...] = out.astype(o_ref.dtype)


def prepare_params(weight, bias, *, lr_mul, param_dtype=None):
    """Build kernel-ready parameters once.

    weight: (N, K) PyTorch layout, bias: (N,).
    Returns (w_kn (Kp, Np), bias_row (1, Np) f32 with lr_mul folded in)."""
    N, K = weight.shape
    Kp, Np = _round_up(K, 128), _round_up(N, 128)
    w_kn = jnp.transpose(weight)                       # (K, N)
    if (Kp, Np) != (K, N):
        w_kn = jnp.pad(w_kn, ((0, Kp - K), (0, Np - N)))
    if param_dtype is not None:
        w_kn = w_kn.astype(param_dtype)
    b = bias.astype(jnp.float32) * jnp.float32(lr_mul)
    if Np != N:
        b = jnp.pad(b, (0, Np - N))
    return w_kn, b.reshape(1, Np)


def equal_linear_padded(x, w_kn, bias_row, *, scale, activation, n_out,
                        tm=512, tn=512, tk=1024):
    """x: (M, K); w_kn: (Kp, Np) pre-transposed/padded; bias_row: (1, Np) f32
    with lr_mul already folded in. Returns (M, n_out) in x.dtype."""
    M, K = x.shape
    Kp, Np = w_kn.shape
    assert Kp >= K and bias_row.shape == (1, Np)

    compute_dtype = w_kn.dtype
    out_dtype = x.dtype
    if x.dtype != compute_dtype:
        x = x.astype(compute_dtype)

    m_align = _sublane_align(compute_dtype)
    Mp = _round_up(M, m_align)

    # Divisor-based tile selection against the 128-padded dims.
    tm = _pick_tile(Mp, tm, m_align)
    tn = _pick_tile(Np, tn, 128)
    tk = _pick_tile(Kp, tk, 128)

    # v7x megacore: guarantee >= 2 blocks on a 'parallel' axis when possible.
    if Mp // tm == 1 and Np // tn == 1:
        if Np >= 256:
            tn2 = _pick_tile(Np, max(128, Np // 2), 128)
            if Np // tn2 >= 2:
                tn = tn2
        if Mp // tm == 1 and Np // tn == 1 and Mp >= 2 * m_align:
            tm2 = _pick_tile(Mp, max(m_align, Mp // 2), m_align)
            if Mp // tm2 >= 2:
                tm = tm2

    if Mp != M or Kp != K:
        x = jnp.pad(x, ((0, Mp - M), (0, Kp - K)))

    grid = (Mp // tm, Np // tn, Kp // tk)
    kernel = functools.partial(_equal_linear_kernel, float(scale),
                               bool(activation))

    isz = jnp.dtype(compute_dtype).itemsize
    osz = jnp.dtype(out_dtype).itemsize
    # Double-buffered input/output tiles + f32 accumulator, 1.5x headroom.
    vmem_bytes = (2 * tm * tk * isz + 2 * tk * tn * isz + 2 * tn * 4
                  + 2 * tm * tn * osz + tm * tn * 4)
    vmem_limit = int(min(100 * 1024 * 1024,
                         max(16 * 1024 * 1024, int(vmem_bytes * 1.5))))

    cost = pl.CostEstimate(
        flops=2 * Mp * Np * Kp,
        transcendentals=0,
        bytes_accessed=(Mp * Kp * isz + Kp * Np * isz + Np * 4
                        + Mp * Np * osz))

    out = pl.pallas_call(
        kernel,
        out_shape=jax.ShapeDtypeStruct((Mp, Np), out_dtype),
        grid=grid,
        in_specs=[
            pl.BlockSpec((tm, tk), lambda i, j, k: (i, k)),   # activations
            pl.BlockSpec((tk, tn), lambda i, j, k: (k, j)),   # weight (K, N)
            pl.BlockSpec((1, tn), lambda i, j, k: (0, j)),    # bias row (f32)
        ],
        out_specs=pl.BlockSpec((tm, tn), lambda i, j, k: (i, j)),
        scratch_shapes=[pltpu.VMEM((tm, tn), jnp.float32)],
        compiler_params=pltpu.CompilerParams(
            dimension_semantics=("parallel", "parallel", "arbitrary"),
            vmem_limit_bytes=vmem_limit),
        cost_estimate=cost,
    )(x, w_kn, bias_row)

    if Mp != M or Np != n_out:
        out = out[:M, :n_out]
    return out


def equal_linear(x, weight, bias, *, scale, lr_mul, activation=False,
                 tm=512, tn=512, tk=1024):
    """Functional path with raw (N, K)/(N,) params (prepares them per call).
    Prefer EqualLinearJAX for repeated forwards (params prepared once)."""
    w_kn, bias_row = prepare_params(weight, bias, lr_mul=lr_mul)
    return equal_linear_padded(x, w_kn, bias_row, scale=scale,
                               activation=activation, n_out=weight.shape[0],
                               tm=tm, tn=tn, tk=tk)


class EqualLinearJAX:
    """Deterministically-initialized JAX equivalent of the PyTorch EqualLinear.

    Weight is transposed/padded (and optionally cast to bf16) once at init and
    lr_mul is folded into the bias, so each forward only pads the activations.
    param_dtype=jnp.bfloat16 halves weight HBM traffic (f32 accumulation kept);
    outputs then differ slightly from the f32 reference.
    """

    def __init__(self, in_dim, out_dim, bias_init=0, lr_mul=1, activation=False,
                 param_dtype=jnp.float32, key=None):
        if key is None:
            key = jax.random.PRNGKey(0)
        # torch.randn(out_dim, in_dim).div_(lr_mul)
        self.weight = (jax.random.normal(key, (out_dim, in_dim), jnp.float32)
                       / lr_mul)
        # torch.zeros(out_dim).fill_(bias_init)
        self.bias = jnp.full((out_dim,), float(bias_init), jnp.float32)
        self.scale = 1.0 / math.sqrt(in_dim) * lr_mul
        self.lr_mul = lr_mul
        self.activation = activation
        self.in_dim = in_dim
        self.out_dim = out_dim
        self.w_kn, self.bias_row = prepare_params(
            self.weight, self.bias, lr_mul=lr_mul, param_dtype=param_dtype)

    def __call__(self, x, *, tm=512, tn=512, tk=1024):
        return equal_linear_padded(x, self.w_kn, self.bias_row,
                                   scale=self.scale,
                                   activation=self.activation,
                                   n_out=self.out_dim, tm=tm, tn=tn, tk=tk)


def _reference(x, weight, bias, scale, lr_mul, activation):
    out = x @ (weight * scale).T + bias * lr_mul
    if activation:
        # Matches F.leaky_relu(out, 0.2) in the spec (no fused sqrt(2) gain).
        # TODO(synk): original StyleGAN2 uses fused_leaky_relu (bias inside the
        # activation + sqrt(2) gain); this spec uses plain leaky_relu.
        out = jnp.where(out >= 0, out, 0.2 * out)
    return out


if __name__ == "__main__":
    key = jax.random.PRNGKey(0)
    k_w, k_x, k2_w, k2_x, k3_w, k3_x = jax.random.split(key, 6)

    # Case 1: small shape, single grid point, lr_mul + activation.
    batch, in_dim, out_dim = 8, 32, 32
    layer = EqualLinearJAX(in_dim, out_dim, bias_init=1.0, lr_mul=0.01,
                           activation=True, key=k_w)
    x = jax.random.normal(k_x, (batch, in_dim), jnp.float32)
    out = jax.block_until_ready(layer(x))
    ref = _reference(x, layer.weight, layer.bias, layer.scale,
                     layer.lr_mul, layer.activation)
    assert out.shape == (batch, out_dim)
    assert jnp.allclose(out, ref, atol=1e-5, rtol=1e-5), "mismatch (small)"

    # Case 2: larger, non-aligned shape exercising divisor-based tiling,
    # multi-tile M/N/K grid, and the 128-padding / slicing path.
    batch2, in_dim2, out_dim2 = 48, 520, 384
    layer2 = EqualLinearJAX(in_dim2, out_dim2, bias_init=0.0, lr_mul=1.0,
                            activation=False, key=k2_w)
    x2 = jax.random.normal(k2_x, (batch2, in_dim2), jnp.float32)
    out2 = jax.block_until_ready(layer2(x2, tm=32, tn=128, tk=256))
    ref2 = _reference(x2, layer2.weight, layer2.bias, layer2.scale,
                      layer2.lr_mul, False)
    assert out2.shape == (batch2, out_dim2)
    assert jnp.allclose(out2, ref2, atol=1e-4, rtol=1e-4), "mismatch (tiled)"

    # Case 3: bf16 parameter path (halved weight stream) + megacore N-split.
    batch3, in_dim3, out_dim3 = 4, 512, 512
    layer3 = EqualLinearJAX(in_dim3, out_dim3, bias_init=0.5, lr_mul=1.0,
                            activation=True, param_dtype=jnp.bfloat16, key=k3_w)
    x3 = jax.random.normal(k3_x, (batch3, in_dim3), jnp.float32)
    out3 = jax.block_until_ready(layer3(x3))
    # Reference uses the same bf16-rounded operands upcast to f32.
    w_c = layer3.weight.astype(jnp.bfloat16).astype(jnp.float32)
    x_c = x3.astype(jnp.bfloat16).astype(jnp.float32)
    ref3 = (x_c @ w_c.T) * layer3.scale + layer3.bias * layer3.lr_mul
    ref3 = jnp.where(ref3 >= 0, ref3, 0.2 * ref3)
    assert out3.shape == (batch3, out_dim3)
    assert jnp.allclose(out3, ref3, atol=1e-2, rtol=1e-2), "mismatch (bf16)"

    print("KERNEL_OK")
</pallas_src>

<mosaic_0001>
module attributes {stable_mosaic.version = 11 : i64} {
  func.func @_equal_linear_kernel(%arg0: i32, %arg1: i32, %arg2: i32, %arg3: memref<8x128xf32, #tpu.memory_space<vmem>>, %arg4: memref<128x128xf32, #tpu.memory_space<vmem>>, %arg5: memref<1x128xf32, #tpu.memory_space<vmem>>, %arg6: memref<8x128xf32, #tpu.memory_space<vmem>>, %arg7: memref<8x128xf32, #tpu.memory_space<vmem>>) attributes {dimension_semantics = [#tpu.dimension_semantics<parallel>, #tpu.dimension_semantics<parallel>, #tpu.dimension_semantics<arbitrary>], iteration_bounds = array<i64: 1, 1, 1>, scalar_prefetch = 0 : i64, scratch_operands = 1 : i64, tpu.core_type = #tpu.core_type<tc>, window_params = [{transform_indices = @transform_0, window_bounds = array<i64: 8, 128>}, {transform_indices = @transform_1, window_bounds = array<i64: 128, 128>}, {transform_indices = @transform_2, window_bounds = array<i64: 1, 128>}, {transform_indices = @transform_3, window_bounds = array<i64: 8, 128>}]} {
    %c0_i32 = arith.constant 0 : i32
    %0 = arith.cmpi eq, %arg2, %c0_i32 : i32
    %1 = arith.extui %0 : i1 to i32
    %c0_i32_0 = arith.constant 0 : i32
    %2 = arith.cmpi ne, %1, %c0_i32_0 : i32
    scf.if %2 {
      %cst_10 = arith.constant 0.000000e+00 : f32
      %12 = vector.broadcast %cst_10 : f32 to vector<8x128xf32>
      %c0_11 = arith.constant 0 : index
      %c0_12 = arith.constant 0 : index
      %13 = vector.load %arg7[%c0_11, %c0_12] : memref<8x128xf32, #tpu.memory_space<vmem>>, vector<8x128xf32>
      tpu.vector_store %arg7[%c0_11, %c0_12], %12 {strides = array<i32>} : memref<8x128xf32, #tpu.memory_space<vmem>>, vector<8x128xf32>,
    } else {
    }
    %c0 = arith.constant 0 : index
    %c0_1 = arith.constant 0 : index
    %3 = vector.load %arg7[%c0, %c0_1] : memref<8x128xf32, #tpu.memory_space<vmem>>, vector<8x128xf32>
    %c0_2 = arith.constant 0 : index
    %c0_3 = arith.constant 0 : index
    %4 = vector.load %arg3[%c0_2, %c0_3] : memref<8x128xf32, #tpu.memory_space<vmem>>, vector<8x128xf32>
    %c0_4 = arith.constant 0 : index
    %c0_5 = arith.constant 0 : index
    %5 = vector.load %arg4[%c0_4, %c0_5] : memref<128x128xf32, #tpu.memory_space<vmem>>, vector<128x128xf32>
    %cst = arith.constant dense<0.000000e+00> : vector<8x128xf32>
    %6 = tpu.matmul %4, %5, %cst {dimension_numbers = #tpu.dot_dimension_numbers<[1], [0], [0], [1], [0, 0, 1, 1], [], []>} : vector<8x128xf32>, vector<128x128xf32>, vector<8x128xf32> -> vector<8x128xf32>
    %7 = arith.addf %3, %6 : vector<8x128xf32>
    %c0_6 = arith.constant 0 : index
    %c0_7 = arith.constant 0 : index
    %8 = vector.load %arg7[%c0_6, %c0_7] : memref<8x128xf32, #tpu.memory_space<vmem>>, vector<8x128xf32>
    tpu.vector_store %arg7[%c0_6, %c0_7], %7 {strides = array<i32>} : memref<8x128xf32, #tpu.memory_space<vmem>>, vector<8x128xf32>,
    %c0_i32_8 = arith.constant 0 : i32
    %9 = arith.cmpi eq, %arg2, %c0_i32_8 : i32
    %10 = arith.extui %9 : i1 to i32
    %c0_i32_9 = arith.constant 0 : i32
    %11 = arith.cmpi ne, %10, %c0_i32_9 : i32
    scf.if %11 {
      %c0_10 = arith.constant 0 : index
      %c0_11 = arith.constant 0 : index
      %12 = vector.load %arg7[%c0_10, %c0_11] : memref<8x128xf32, #tpu.memory_space<vmem>>, vector<8x128xf32>
      %cst_12 = arith.constant 0.00176776689 : f32
      %13 = vector.broadcast %cst_12 : f32 to vector<8x128xf32>
      %14 = arith.mulf %12, %13 : vector<8x128xf32>
      %c0_13 = arith.constant 0 : index
      %c0_14 = arith.constant 0 : index
      %15 = vector.load %arg5[%c0_13, %c0_14] : memref<1x128xf32, #tpu.memory_space<vmem>>, vector<1x128xf32>
      %16 = vector.broadcast %15 : vector<1x128xf32> to vector<8x128xf32>
      %17 = arith.addf %14, %16 : vector<8x128xf32>
      %cst_15 = arith.constant 2.000000e-01 : f32
      %18 = vector.broadcast %cst_15 : f32 to vector<8x128xf32>
      %19 = arith.mulf %18, %17 : vector<8x128xf32>
      %20 = arith.maximumf %17, %19 : vector<8x128xf32>
      %c0_16 = arith.constant 0 : index
      %c0_17 = arith.constant 0 : index
      %21 = vector.load %arg6[%c0_16, %c0_17] : memref<8x128xf32, #tpu.memory_space<vmem>>, vector<8x128xf32>
      tpu.vector_store %arg6[%c0_16, %c0_17], %20 {strides = array<i32>} : memref<8x128xf32, #tpu.memory_space<vmem>>, vector<8x128xf32>,
    } else {
    }
    return
  }
  func.func @transform_0(%arg0: i32, %arg1: i32, %arg2: i32) -> (i32, i32) {
    %c0_i32 = arith.constant 0 : i32
    return %arg0, %arg2 : i32, i32
  }
  func.func @transform_1(%arg0: i32, %arg1: i32, %arg2: i32) -> (i32, i32) {
    %c0_i32 = arith.constant 0 : i32
    return %arg2, %arg1 : i32, i32
  }
  func.func @transform_2(%arg0: i32, %arg1: i32, %arg2: i32) -> (i32, i32) {
    %c0_i32 = arith.constant 0 : i32
    %c0_i32_0 = arith.constant 0 : i32
    return %c0_i32, %arg1 : i32, i32
  }
  func.func @transform_3(%arg0: i32, %arg1: i32, %arg2: i32) -> (i32, i32) {
    %c0_i32 = arith.constant 0 : i32
    return %arg0, %arg1 : i32, i32
  }
}

</mosaic_0001>

<llo_original>
// kernel: tpu_custom_call.1
$region0: #{tpu_custom_call.1}
  #allocation0 [shape = 'u32[]', space=smem, size = 0x4, offset = 0x4, fixed_abs, tag = 'smem constant byte address 0x4 - core index']
  #allocation1 [shape = 'u32[144,128]{1,0:T(1,128)}', space=vmem, size = 0x12000, scoped, tag = 'internal scratch']
  #allocation2 [shape = 'f32[8,128]{1,0:T(8,128)}', space=vmem, size = 0x1000, scoped, tag = 'scratch operand']
  %s0 = inlined_call_operand.hbm [shape: f32[8,128], index: 0, kind: input, shape index: {}]
  %s1 = inlined_call_operand.hbm [shape: f32[128,128], index: 1, kind: input, shape index: {}]
  %s2 = inlined_call_operand.vmem [shape: f32[1,128], index: 2, kind: input, shape index: {}]
  %s3 = inlined_call_operand.hbm [shape: f32[8,128], index: 3, kind: output, shape index: {}]
  %s4 = sld [smem:[#allocation0]]
  $region38: #{tpu_custom_call.1} parent=0
    _
  %s6 = ssub.s32 1, %s4
  %s7 = scalar_select 0, %s6, %s4
  $region1: #{tpu_custom_call.1} parent=0
    #allocation3 [shape = 'u8[4096]{0}', space=vmem, size = 0x1000, scoped, tag = 'input window, operand 0, single buffered']
    #allocation4 [shape = 's32[1]{0}', space=sflag, size = 0x4, scoped, tag = 'scoped memory for tpu_custom_call.1']
    #allocation5 [shape = 's32[1]{0}', space=sflag, size = 0x4, scoped, tag = 'scoped memory for tpu_custom_call.1']
    #allocation6 [shape = 'u8[65536]{0}', space=vmem, size = 0x10000, scoped, tag = 'input window, operand 1, single buffered']
    #allocation7 [shape = 's32[1]{0}', space=sflag, size = 0x4, scoped, tag = 'scoped memory for tpu_custom_call.1']
    #allocation8 [shape = 'u8[4096]{0}', space=vmem, size = 0x1000, scoped, tag = 'output window, operand 0, single buffered']
    %8 = vsyncpa [#allocation4], 0
    %9 = vsyncpa [#allocation7], 0
    %10 = vsyncpa [#allocation5], 0
    // Predicated region
    $region2: #{tpu_custom_call.1} parent=1 // pred_check
      _
    $region3: #{tpu_custom_call.1} parent=1 // pred_check_branch
      %12 = sbr.rel (0) target = $region5
    $region4: #{tpu_custom_call.1} parent=1 // pred_region
      %s14 = ssub.s32 128, 128
      %15 = vsyncadd [#allocation4], %s14
      %s17 = sshll.u32 [#allocation3], 4
      %s18 = int_to_ptr.vmem [resolvable:$true] %s17
      %20 = dma.hbm_to_vmem [thread:$0]  %s0, 128, %s18, [#allocation4]
    $region5: #{tpu_custom_call.1} parent=1 // pred_fallthru
      _
    // Predicated region
    $region6: #{tpu_custom_call.1} parent=1 // pred_check
      _
    $region7: #{tpu_custom_call.1} parent=1 // pred_check_branch
      %22 = sbr.rel (0) target = $region9
    $region8: #{tpu_custom_call.1} parent=1 // pred_region
      %s24 = ssub.s32 2048, 2048
      %25 = vsyncadd [#allocation7], %s24
      %s26 = sshll.u32 [#allocation6], 4
      %s27 = int_to_ptr.vmem [resolvable:$true] %s26
      %32 = dma.hbm_to_vmem [thread:$0]  %s1, 2048, %s27, [#allocation7], 128, 128, 8
    $region9: #{tpu_custom_call.1} parent=1 // pred_fallthru
      _
    // Predicated region
    $region10: #{tpu_custom_call.1} parent=1 // pred_check
      _
    $region11: #{tpu_custom_call.1} parent=1 // pred_check_branch
      %34 = sbr.rel (0) target = $region13
    $region12: #{tpu_custom_call.1} parent=1 // pred_region
      _
    $region13: #{tpu_custom_call.1} parent=1 // pred_fallthru
      _
    // Predicated region
    $region14: #{tpu_custom_call.1} parent=1 // pred_check
      _
    $region15: #{tpu_custom_call.1} parent=1 // pred_check_branch
      %36 = sbr.rel (0) target = $region17
    $region16: #{tpu_custom_call.1} parent=1 // pred_region
      %37 = dma.done [#allocation4], 128
    $region17: #{tpu_custom_call.1} parent=1 // pred_fallthru
      _
    // Predicated region
    $region18: #{tpu_custom_call.1} parent=1 // pred_check
      _
    $region19: #{tpu_custom_call.1} parent=1 // pred_check_branch
      %39 = sbr.rel (0) target = $region21
    $region20: #{tpu_custom_call.1} parent=1 // pred_region
      %40 = dma.done [#allocation7], 2048
    $region21: #{tpu_custom_call.1} parent=1 // pred_fallthru
      _
    %p41 = scmp.eq.s32.totalorder 0, 0
    // Predicated region
    $region22: #{tpu_custom_call.1} parent=1 // pred_check
      %p42 = pneg %p41
    $region23: #{tpu_custom_call.1} parent=1 // pred_check_branch
      %44 = sbr.rel (%p42) target = $region25
    $region24: #{tpu_custom_call.1} parent=1 // pred_region
      %45 = vst [vmem:[#allocation2] sm:$0xff] 0.0
    $region25: #{tpu_custom_call.1} parent=1 // pred_fallthru
      _
    %v46 = vld [vmem:[#allocation2] sm:$0xff]
    %v47 = vld [vmem:[#allocation3] sm:$0xff]
    %v48 = vld [vmem:[#allocation6] sm:$0xff]
    %v49 = vld [vmem:[#allocation6 + $0x8] sm:$0xff]
    %v50 = vld [vmem:[#allocation6 + $0x10] sm:$0xff]
    %v51 = vld [vmem:[#allocation6 + $0x18] sm:$0xff]
    %v52 = vld [vmem:[#allocation6 + $0x20] sm:$0xff]
    %v53 = vld [vmem:[#allocation6 + $0x28] sm:$0xff]
    %v54 = vld [vmem:[#allocation6 + $0x30] sm:$0xff]
    %v55 = vld [vmem:[#allocation6 + $0x38] sm:$0xff]
    %v56 = vld [vmem:[#allocation6 + $0x40] sm:$0xff]
    %v57 = vld [vmem:[#allocation6 + $0x48] sm:$0xff]
    %v58 = vld [vmem:[#allocation6 + $0x50] sm:$0xff]
    %v59 = vld [vmem:[#allocation6 + $0x58] sm:$0xff]
    %v60 = vld [vmem:[#allocation6 + $0x60] sm:$0xff]
    %v61 = vld [vmem:[#allocation6 + $0x68] sm:$0xff]
    %v62 = vld [vmem:[#allocation6 + $0x70] sm:$0xff]
    %v63 = vld [vmem:[#allocation6 + $0x78] sm:$0xff]
    %64 = vmatprep.subr.mxu0 0.0
    %65 = vmatpush1.msra.mxu0 %v48
    %66 = vmatprep.subr.mxu0 0.0
    %67 = vmatpush1.msra.mxu0 %v49
    %68 = vmatprep.subr.mxu0 0.0
    %69 = vmatpush1.msra.mxu0 %v50
    %70 = vmatprep.subr.mxu0 0.0
    %71 = vmatpush1.msra.mxu0 %v51
    %72 = vmatprep.subr.mxu0 0.0
    %73 = vmatpush1.msra.mxu0 %v52
    %74 = vmatprep.subr.mxu0 0.0
    %75 = vmatpush1.msra.mxu0 %v53
    %76 = vmatprep.subr.mxu0 0.0
    %77 = vmatpush1.msra.mxu0 %v54
    %78 = vmatprep.subr.mxu0 0.0
    %79 = vmatpush1.msra.mxu0 %v55
    %80 = vmatprep.subr.mxu0 0.0
    %81 = vmatpush1.msra.mxu0 %v56
    %82 = vmatprep.subr.mxu0 0.0
    %83 = vmatpush1.msra.mxu0 %v57
    %84 = vmatprep.subr.mxu0 0.0
    %85 = vmatpush1.msra.mxu0 %v58
    %86 = vmatprep.subr.mxu0 0.0
    %87 = vmatpush1.msra.mxu0 %v59
    %88 = vmatprep.subr.mxu0 0.0
    %89 = vmatpush1.msra.mxu0 %v60
    %90 = vmatprep.subr.mxu0 0.0
    %91 = vmatpush1.msra.mxu0 %v61
    %92 = vmatprep.subr.mxu0 0.0
    %93 = vmatpush1.msra.mxu0 %v62
    %94 = vmatprep.subr.mxu0 0.0
    %95 = vmatpush1.msra.mxu0 %v63
    %96 = vmatprep.subr.mxu0 0.0
    %97 = vmatpush1.msra.mxu0 0.0
    %98 = vmatprep.subr.mxu0 0.0
    %99 = vmatpush1.msra.mxu0 0.0
    %100 = vmatprep.subr.mxu0 0.0
    %101 = vmatpush1.msra.mxu0 0.0
    %102 = vmatprep.subr.mxu0 0.0
    %103 = vmatpush1.msra.mxu0 0.0
    %104 = vmatprep.subr.mxu0 0.0
    %105 = vmatpush1.msra.mxu0 0.0
    %106 = vmatprep.subr.mxu0 0.0
    %107 = vmatpush1.msra.mxu0 0.0
    %108 = vmatprep.subr.mxu0 0.0
    %109 = vmatpush1.msra.mxu0 0.0
    %110 = vmatprep.subr.mxu0 0.0
    %111 = vmatpush1.msra.mxu0 0.0
    %112 = vmatprep.subr.mxu0 0.0
    %113 = vmatpush1.msra.mxu0 0.0
    %114 = vmatprep.subr.mxu0 0.0
    %115 = vmatpush1.msra.mxu0 0.0
    %116 = vmatprep.subr.mxu0 0.0
    %117 = vmatpush1.msra.mxu0 0.0
    %118 = vmatprep.subr.mxu0 0.0
    %119 = vmatpush1.msra.mxu0 0.0
    %120 = vmatprep.subr.mxu0 0.0
    %121 = vmatpush1.msra.mxu0 0.0
    %122 = vmatprep.subr.mxu0 0.0
    %123 = vmatpush1.msra.mxu0 0.0
    %124 = vmatprep.subr.mxu0 0.0
    %125 = vmatpush1.msra.mxu0 0.0
    %126 = vmatprep.subr.mxu0 0.0
    %127 = vmatpush1.msra.mxu0 0.0
    %128 = vmatprep.mubr.f32.mxu0 0.0
    %129 = vmatmul.mubr.f32.gmra.mrb[0].mxu0 %v47
    %v130 = vpop.f32.mrb[0].mxu0
    %v131 = vadd.f32 0.0, %v130
    %v132 = vpop.f32.mrb[0].mxu0
    %133 = vdwg.mxu0
    %v134 = vadd.f32 %v46, %v131
    %135 = vst [vmem:[#allocation2] sm:$0xff] %v134
    // Predicated region
    $region26: #{tpu_custom_call.1} parent=1 // pred_check
      %p136 = pneg %p41
    $region27: #{tpu_custom_call.1} parent=1 // pred_check_branch
      %138 = sbr.rel (%p136) target = $region29
    $region28: #{tpu_custom_call.1} parent=1 // pred_region
      %v139 = vld [vmem:[#allocation2] sm:$0xff]
      %v140 = vmul.f32 %v139, 0.0017677669
      %v141 = vld [vmem:[%s2] sm:$0x1]
      %v143 = vlaneseq
      %v144 = vshrl.u32 %v143, 7
      %v145 = vsub.s32 0, %v144
      %v146 = vrot.slane %v141, %v145
      %v148 = vadd.f32 %v140, %v146
      %v149 = vmul.f32 %v148, 0.2
      %v150 = vmax.f32 %v148, %v149
      %151 = vst [vmem:[#allocation8] sm:$0xff] %v150
    $region29: #{tpu_custom_call.1} parent=1 // pred_fallthru
      _
    // Predicated region
    $region30: #{tpu_custom_call.1} parent=1 // pred_check
      _
    $region31: #{tpu_custom_call.1} parent=1 // pred_check_branch
      %153 = sbr.rel (0) target = $region33
    $region32: #{tpu_custom_call.1} parent=1 // pred_region
      %s155 = ssub.s32 128, 128
      %156 = vsyncadd [#allocation5], %s155
      %s158 = sshll.u32 [#allocation8], 4
      %s159 = int_to_ptr.vmem [resolvable:$true] %s158
      %161 = dma.vmem_to_hbm [thread:$0]  %s159, 128, %s3, [#allocation5]
    $region33: #{tpu_custom_call.1} parent=1 // pred_fallthru
      _
    // Predicated region
    $region34: #{tpu_custom_call.1} parent=1 // pred_check
      _
    $region35: #{tpu_custom_call.1} parent=1 // pred_check_branch
      %163 = sbr.rel (0) target = $region37
    $region36: #{tpu_custom_call.1} parent=1 // pred_region
      %164 = dma.done [#allocation5], 128
    $region37: #{tpu_custom_call.1} parent=1 // pred_fallthru
      _
    %165 = vsyncpa [#allocation4], 1
    %166 = vsyncpa [#allocation7], 1
    %167 = vsyncpa [#allocation5], 1

</llo_original>
